<compile_context>
chip_gen: v5e
topology: v5e:2x2
jax: 0.10.0
libtpu: 0.0.40
codegen_flags: <defaults>
</compile_context>

<pallas_src>
from typing import NamedTuple

import jax
import jax.numpy as jnp
from jax.experimental import pallas as pl
from jax.experimental.pallas import tpu as pltpu


# ----------------------------------------------------------------------------
# Small helpers
# ----------------------------------------------------------------------------
def _cdiv(a, b):
    return -(-a // b)


def _round_up(x, m):
    return _cdiv(x, m) * m


def _physical_vmem_bytes():
    """Per-TensorCore VMEM capacity in bytes, with conservative fallbacks."""
    try:
        cap = int(pltpu.get_tpu_info().vmem_capacity_bytes)
        if cap > 0:
            return cap
    except Exception:
        pass
    try:
        kind = jax.devices()[0].device_kind.lower()
    except Exception:
        kind = ""
    if "v7" in kind:
        return 64 << 20
    return 128 << 20


def _feature_multiple(fout):
    """MXU-friendly feature padding: 256 on v6e/v7x (256-wide MXU), 128 on v5e
    and older. Never blow an F <= 128 problem up to 256."""
    if fout <= 128:
        return 128
    try:
        kind = jax.devices()[0].device_kind.lower()
    except Exception:
        kind = ""
    for old in ("v2", "v3", "v4", "v5"):
        if old in kind:
            return 128
    return 256


def _const_block_spec(shape, index_map):
    # Constant index_map => nothing to pipeline; single-buffer to halve the
    # resident VMEM footprint. Fall back if this BlockSpec has no
    # pipeline_mode kwarg.
    try:
        return pl.BlockSpec(shape, index_map, pipeline_mode=pl.Buffered(1))
    except TypeError:
        return pl.BlockSpec(shape, index_map)


def _choose_batch_tile(batch, fp, x_bytes, out_bytes, avail_bytes, *,
                       extra_row_bytes=0, target=512):
    """Pick a batch tile that fits the VMEM budget, gives >=2 grid steps for
    v7x megacore when B permits, and minimizes batch padding."""
    # Per-row VMEM cost: double-buffered x + out tiles plus in-kernel bf16/f32
    # temporaries (x cast, h, h cast, y) ~ 16 bytes/element of margin.
    per_row = fp * (2 * x_bytes + 2 * out_bytes + 16) + extra_row_bytes
    max_tb = max(8, (max(avail_bytes, 0) // per_row) // 8 * 8)
    tb = min(target, max_tb)
    if batch >= 16:
        # >= 2 grid steps so dimension_semantics=("parallel",) can shard the
        # batch axis across both v7x TensorCores (free on 1-TC v5e/v6e).
        tb = min(tb, _round_up(_cdiv(batch, 2), 8))
    tb = max(tb, 8)
    # Distribute B evenly over the tiles -> padding <= 7 rows per tile.
    num_tiles = _cdiv(batch, tb)
    tb = _round_up(_cdiv(batch, num_tiles), 8)
    return tb, num_tiles


def _pad_activations(x, bp, fp):
    b, f = x.shape
    if b == bp and f == fp:
        return x  # already tile-aligned: no HBM padding traffic
    return jnp.zeros((bp, fp), x.dtype).at[:b, :f].set(x)


# ----------------------------------------------------------------------------
# Parameter preparation (hoisted out of the per-call path)
# ----------------------------------------------------------------------------
class ResLinearParams(NamedTuple):
    w0: jax.Array   # [Fp, Fp], weights_dtype, pre-transposed so kernel does x @ W0
    b0: jax.Array   # [1, Fp], f32
    w1: jax.Array   # [Fp, Fp], weights_dtype
    b1: jax.Array   # [1, Fp], f32
    fout: int       # logical feature count


def prepare_res_linear_params(w0_t, b0, w1_t, b1, *, weights_dtype=jnp.bfloat16):
    """Pad + cast weights/biases ONCE (call at model init, reuse per step).

    w0_t / w1_t are pre-transposed to [F_in, F_out].
    """
    fin, fout = w0_t.shape
    assert fin == fout, "ResLinearBlock residual path requires in_features == out_features"
    assert w1_t.shape == (fout, fout)
    fp = _round_up(fout, _feature_multiple(fout))
    w0p = jnp.zeros((fp, fp), weights_dtype).at[:fin, :fout].set(w0_t.astype(weights_dtype))
    w1p = jnp.zeros((fp, fp), weights_dtype).at[:fout, :fout].set(w1_t.astype(weights_dtype))
    b0p = jnp.zeros((1, fp), jnp.float32).at[0, :fout].set(b0.astype(jnp.float32))
    b1p = jnp.zeros((1, fp), jnp.float32).at[0, :fout].set(b1.astype(jnp.float32))
    return ResLinearParams(w0p, b0p, w1p, b1p, fout)


# ----------------------------------------------------------------------------
# Kernels
# ----------------------------------------------------------------------------
def _resident_kernel(x_ref, w0_ref, b0_ref, w1_ref, b1_ref, o_ref):
    """Both (Fp, Fp) weights resident in VMEM; one batch tile per grid step."""
    x = x_ref[...]
    xf = x.astype(jnp.float32)                                   # residual path
    h = jnp.dot(x.astype(w0_ref.dtype), w0_ref[...],
                preferred_element_type=jnp.float32)              # [TB, Fp] f32 acc
    h = jnp.maximum(h + b0_ref[...], 0.0)
    y = jnp.dot(h.astype(w1_ref.dtype), w1_ref[...],
                preferred_element_type=jnp.float32)              # [TB, Fp] f32 acc
    o_ref[...] = jnp.maximum(xf + y + b1_ref[...], 0.0).astype(o_ref.dtype)


def _feature_tiled_kernel(x_ref, w0_ref, b0_ref, w1_ref, b1_ref, o_ref, acc_ref):
    """Weights streamed in feature blocks; grid = (batch_tiles, feature_tiles).

    Per feature block j:
      h_j  = relu(x @ W0[:, j] + b0[j])      # [TB, TF]
      acc += h_j @ W1[j, :]                  # [TB, Fp]
    so the full hidden activation is never materialized.
    """
    j = pl.program_id(1)

    @pl.when(j == 0)
    def _():
        acc_ref[...] = jnp.zeros_like(acc_ref)

    x = x_ref[...]
    hj = jnp.dot(x.astype(w0_ref.dtype), w0_ref[...],
                 preferred_element_type=jnp.float32)
    hj = jnp.maximum(hj + b0_ref[...], 0.0)
    acc_ref[...] += jnp.dot(hj.astype(w1_ref.dtype), w1_ref[...],
                            preferred_element_type=jnp.float32)

    @pl.when(j == pl.num_programs(1) - 1)
    def _():
        y = acc_ref[...] + b1_ref[...] + x.astype(jnp.float32)
        o_ref[...] = jnp.maximum(y, 0.0).astype(o_ref.dtype)


# ----------------------------------------------------------------------------
# Host-side wrapper
# ----------------------------------------------------------------------------
def res_linear_block_apply(x, params, *, out_dtype=jnp.float32,
                           force_feature_tiled=False, max_feature_tile=512):
    """y = relu(x + (relu(x @ W0 + b0) @ W1 + b1)); x: [B, F]."""
    w0p, b0p, w1p, b1p, fout = params
    b, fin = x.shape
    assert fin == fout, "input feature dim must match the prepared params"
    fp = w0p.shape[0]
    wbytes = jnp.dtype(w0p.dtype).itemsize
    xbytes = jnp.dtype(x.dtype).itemsize
    obytes = jnp.dtype(out_dtype).itemsize

    vmem_cap = int(_physical_vmem_bytes() * 0.9)   # never exceed physical VMEM
    headroom = 8 << 20                              # Mosaic internal scratch + slack

    resident_weight_bytes = 2 * fp * fp * wbytes + 2 * fp * 4
    use_resident = (not force_feature_tiled) and (resident_weight_bytes <= vmem_cap // 2)

    if use_resident:
        # ---------------- resident-weights path ----------------
        avail = vmem_cap - resident_weight_bytes - headroom
        tb, num_tiles = _choose_batch_tile(b, fp, xbytes, obytes, avail)
        bp = tb * num_tiles
        xp = _pad_activations(x, bp, fp)

        vmem_need = (resident_weight_bytes
                     + tb * fp * (2 * xbytes + 2 * obytes + 16)
                     + headroom)
        vmem_limit = int(min(max(vmem_need, 32 << 20), vmem_cap))
        flops = 4 * bp * fp * fp
        bytes_accessed = bp * fp * (xbytes + obytes) + resident_weight_bytes

        out_p = pl.pallas_call(
            _resident_kernel,
            out_shape=jax.ShapeDtypeStruct((bp, fp), out_dtype),
            grid=(num_tiles,),
            in_specs=[
                pl.BlockSpec((tb, fp), lambda i: (i, 0)),         # x: streamed
                _const_block_spec((fp, fp), lambda i: (0, 0)),    # w0: resident, 1-buffered
                _const_block_spec((1, fp), lambda i: (0, 0)),     # b0
                _const_block_spec((fp, fp), lambda i: (0, 0)),    # w1
                _const_block_spec((1, fp), lambda i: (0, 0)),     # b1
            ],
            out_specs=pl.BlockSpec((tb, fp), lambda i: (i, 0)),
            compiler_params=pltpu.CompilerParams(
                dimension_semantics=("parallel",),                # megacore batch split
                vmem_limit_bytes=vmem_limit,
            ),
            cost_estimate=pl.CostEstimate(
                flops=flops, transcendentals=0, bytes_accessed=bytes_accessed),
        )(xp, w0p, b0p, w1p, b1p)
    else:
        # ---------------- feature-tiled fallback ----------------
        # Largest feature tile (multiple of 128, divides Fp, <= max_feature_tile)
        # whose double-buffered weight blocks fit ~40% of the VMEM budget.
        budget = int(vmem_cap * 0.4)
        tf = 128
        cand = 128
        while cand <= min(fp, max(128, max_feature_tile)):
            if fp % cand == 0 and 4 * fp * cand * wbytes <= budget:
                tf = cand
            cand += 128
        nj = fp // tf

        weight_stream_bytes = 4 * fp * tf * wbytes               # 2 matrices x 2 buffers
        avail = vmem_cap - weight_stream_bytes - headroom
        tb, num_tiles = _choose_batch_tile(b, fp, xbytes, obytes, avail,
                                           extra_row_bytes=fp * 4)  # acc scratch
        bp = tb * num_tiles
        xp = _pad_activations(x, bp, fp)

        vmem_need = (weight_stream_bytes
                     + tb * fp * (2 * xbytes + 2 * obytes + 16)
                     + tb * fp * 4                                # acc scratch
                     + 4 * tf * 4 + 2 * fp * 4                    # bias blocks
                     + headroom)
        vmem_limit = int(min(max(vmem_need, 32 << 20), vmem_cap))
        flops = 4 * bp * fp * fp
        bytes_accessed = bp * fp * (xbytes + obytes) + 2 * fp * fp * wbytes + 2 * fp * 4

        out_p = pl.pallas_call(
            _feature_tiled_kernel,
            out_shape=jax.ShapeDtypeStruct((bp, fp), out_dtype),
            grid=(num_tiles, nj),
            in_specs=[
                pl.BlockSpec((tb, fp), lambda i, j: (i, 0)),      # x: held across j
                pl.BlockSpec((fp, tf), lambda i, j: (0, j)),      # w0 column block
                pl.BlockSpec((1, tf), lambda i, j: (0, j)),       # b0 block
                pl.BlockSpec((tf, fp), lambda i, j: (j, 0)),      # w1 row block
                _const_block_spec((1, fp), lambda i, j: (0, 0)),  # b1
            ],
            out_specs=pl.BlockSpec((tb, fp), lambda i, j: (i, 0)),
            scratch_shapes=[pltpu.VMEM((tb, fp), jnp.float32)],
            compiler_params=pltpu.CompilerParams(
                dimension_semantics=("parallel", "arbitrary"),
                vmem_limit_bytes=vmem_limit,
            ),
            cost_estimate=pl.CostEstimate(
                flops=flops, transcendentals=0, bytes_accessed=bytes_accessed),
        )(xp, w0p, b0p, w1p, b1p)

    return out_p[:b, :fout]


def res_linear_block(x, w0_t, b0, w1_t, b1, **kwargs):
    """Convenience wrapper (pads/casts weights per call; prefer preparing once)."""
    params = prepare_res_linear_params(w0_t, b0, w1_t, b1)
    return res_linear_block_apply(x, params, **kwargs)


# ----------------------------------------------------------------------------
# References
# ----------------------------------------------------------------------------
def reference_f32(x, w0_t, b0, w1_t, b1):
    h = jnp.maximum(x @ w0_t + b0, 0.0)
    y = h @ w1_t + b1
    return jnp.maximum(x + y, 0.0)


def reference_mixed(x, w0_t, b0, w1_t, b1):
    # Same bf16-matmul-input / f32-accumulate recipe as the default kernel path.
    h = jnp.dot(x.astype(jnp.bfloat16), w0_t.astype(jnp.bfloat16),
                preferred_element_type=jnp.float32) + b0
    h = jnp.maximum(h, 0.0)
    y = jnp.dot(h.astype(jnp.bfloat16), w1_t.astype(jnp.bfloat16),
                preferred_element_type=jnp.float32) + b1
    return jnp.maximum(x + y, 0.0)


def _make_inputs(key, batch, feat):
    kx, kw0, kb0, kw1, kb1 = jax.random.split(key, 5)
    bound = 1.0 / (feat ** 0.5)   # nn.Linear default init range
    w0_t = jax.random.uniform(kw0, (feat, feat), jnp.float32, -bound, bound)
    b0 = jax.random.uniform(kb0, (feat,), jnp.float32, -bound, bound)
    w1_t = jax.random.uniform(kw1, (feat, feat), jnp.float32, -bound, bound)
    b1 = jax.random.uniform(kb1, (feat,), jnp.float32, -bound, bound)
    x = jax.random.normal(kx, (batch, feat), jnp.float32)
    return x, w0_t, b0, w1_t, b1


if __name__ == "__main__":
    key = jax.random.PRNGKey(0)
    k1, k2 = jax.random.split(key)

    # ---- main test: resident-weights path (B=16, F=128) ----
    B, F = 16, 128
    x, w0_t, b0, w1_t, b1 = _make_inputs(k1, B, F)
    params = prepare_res_linear_params(w0_t, b0, w1_t, b1)          # hoisted pad/cast
    out = jax.block_until_ready(res_linear_block_apply(x, params))
    assert out.shape == (B, F)

    ref_mixed = reference_mixed(x, w0_t, b0, w1_t, b1)
    ref_f32 = reference_f32(x, w0_t, b0, w1_t, b1)
    assert jnp.allclose(out, ref_mixed, atol=1e-4, rtol=1e-4), "mismatch vs mixed-precision reference"
    assert jnp.allclose(out, ref_f32, atol=5e-2, rtol=5e-2), "mismatch vs f32 reference"

    # ---- exercise the feature-tiled fallback (F=256, TF=128 -> 2 K blocks) ----
    B2, F2 = 24, 256
    x2, w0b, b0b, w1b, b1b = _make_inputs(k2, B2, F2)
    params2 = prepare_res_linear_params(w0b, b0b, w1b, b1b)
    out2 = jax.block_until_ready(
        res_linear_block_apply(x2, params2, force_feature_tiled=True, max_feature_tile=128))
    ref2 = reference_mixed(x2, w0b, b0b, w1b, b1b)
    assert out2.shape == (B2, F2)
    assert jnp.allclose(out2, ref2, atol=1e-4, rtol=1e-4), "feature-tiled path mismatch"

    # ---- exercise the accuracy-sensitive f32-weight path ----
    params_f32 = prepare_res_linear_params(w0_t, b0, w1_t, b1, weights_dtype=jnp.float32)
    out3 = jax.block_until_ready(res_linear_block_apply(x, params_f32))
    assert jnp.allclose(out3, ref_f32, atol=2e-3, rtol=2e-3), "f32-weight path mismatch"

    print("KERNEL_OK")
</pallas_src>

<mosaic_0001>
module attributes {stable_mosaic.version = 11 : i64} {
  func.func @_resident_kernel(%arg0: i32, %arg1: memref<8x128xf32, #tpu.memory_space<vmem>>, %arg2: memref<128x128xbf16, #tpu.memory_space<vmem>>, %arg3: memref<1x128xf32, #tpu.memory_space<vmem>>, %arg4: memref<128x128xbf16, #tpu.memory_space<vmem>>, %arg5: memref<1x128xf32, #tpu.memory_space<vmem>>, %arg6: memref<8x128xf32, #tpu.memory_space<vmem>>) attributes {dimension_semantics = [#tpu.dimension_semantics<parallel>], iteration_bounds = array<i64: 2>, scalar_prefetch = 0 : i64, scratch_operands = 0 : i64, tpu.core_type = #tpu.core_type<tc>, window_params = [{transform_indices = @transform_0, window_bounds = array<i64: 8, 128>}, {pipeline_mode = #tpu.pipeline_mode<synchronous>, transform_indices = @transform_1, window_bounds = array<i64: 128, 128>}, {pipeline_mode = #tpu.pipeline_mode<synchronous>, transform_indices = @transform_2, window_bounds = array<i64: 1, 128>}, {pipeline_mode = #tpu.pipeline_mode<synchronous>, transform_indices = @transform_3, window_bounds = array<i64: 128, 128>}, {pipeline_mode = #tpu.pipeline_mode<synchronous>, transform_indices = @transform_4, window_bounds = array<i64: 1, 128>}, {transform_indices = @transform_5, window_bounds = array<i64: 8, 128>}]} {
    %c0 = arith.constant 0 : index
    %c0_0 = arith.constant 0 : index
    %0 = vector.load %arg1[%c0, %c0_0] : memref<8x128xf32, #tpu.memory_space<vmem>>, vector<8x128xf32>
    %1 = arith.truncf %0 : vector<8x128xf32> to vector<8x128xbf16>
    %c0_1 = arith.constant 0 : index
    %c0_2 = arith.constant 0 : index
    %2 = vector.load %arg2[%c0_1, %c0_2] : memref<128x128xbf16, #tpu.memory_space<vmem>>, vector<128x128xbf16>
    %cst = arith.constant dense<0.000000e+00> : vector<8x128xf32>
    %3 = tpu.matmul %1, %2, %cst {dimension_numbers = #tpu.dot_dimension_numbers<[1], [0], [0], [1], [0, 0, 1, 1], [], []>} : vector<8x128xbf16>, vector<128x128xbf16>, vector<8x128xf32> -> vector<8x128xf32>
    %c0_3 = arith.constant 0 : index
    %c0_4 = arith.constant 0 : index
    %4 = vector.load %arg3[%c0_3, %c0_4] : memref<1x128xf32, #tpu.memory_space<vmem>>, vector<1x128xf32>
    %5 = vector.broadcast %4 : vector<1x128xf32> to vector<8x128xf32>
    %6 = arith.addf %3, %5 : vector<8x128xf32>
    %cst_5 = arith.constant 0.000000e+00 : f32
    %7 = vector.broadcast %cst_5 : f32 to vector<8x128xf32>
    %8 = arith.maximumf %6, %7 : vector<8x128xf32>
    %9 = arith.truncf %8 : vector<8x128xf32> to vector<8x128xbf16>
    %c0_6 = arith.constant 0 : index
    %c0_7 = arith.constant 0 : index
    %10 = vector.load %arg4[%c0_6, %c0_7] : memref<128x128xbf16, #tpu.memory_space<vmem>>, vector<128x128xbf16>
    %cst_8 = arith.constant dense<0.000000e+00> : vector<8x128xf32>
    %11 = tpu.matmul %9, %10, %cst_8 {dimension_numbers = #tpu.dot_dimension_numbers<[1], [0], [0], [1], [0, 0, 1, 1], [], []>} : vector<8x128xbf16>, vector<128x128xbf16>, vector<8x128xf32> -> vector<8x128xf32>
    %12 = arith.addf %0, %11 : vector<8x128xf32>
    %c0_9 = arith.constant 0 : index
    %c0_10 = arith.constant 0 : index
    %13 = vector.load %arg5[%c0_9, %c0_10] : memref<1x128xf32, #tpu.memory_space<vmem>>, vector<1x128xf32>
    %14 = vector.broadcast %13 : vector<1x128xf32> to vector<8x128xf32>
    %15 = arith.addf %12, %14 : vector<8x128xf32>
    %cst_11 = arith.constant 0.000000e+00 : f32
    %16 = vector.broadcast %cst_11 : f32 to vector<8x128xf32>
    %17 = arith.maximumf %15, %16 : vector<8x128xf32>
    %c0_12 = arith.constant 0 : index
    %c0_13 = arith.constant 0 : index
    %18 = vector.load %arg6[%c0_12, %c0_13] : memref<8x128xf32, #tpu.memory_space<vmem>>, vector<8x128xf32>
    tpu.vector_store %arg6[%c0_12, %c0_13], %17 {strides = array<i32>} : memref<8x128xf32, #tpu.memory_space<vmem>>, vector<8x128xf32>,
    return
  }
  func.func @transform_0(%arg0: i32) -> (i32, i32) {
    %c0_i32 = arith.constant 0 : i32
    %c0_i32_0 = arith.constant 0 : i32
    return %arg0, %c0_i32 : i32, i32
  }
  func.func @transform_1(%arg0: i32) -> (i32, i32) {
    %c0_i32 = arith.constant 0 : i32
    %c0_i32_0 = arith.constant 0 : i32
    %c0_i32_1 = arith.constant 0 : i32
    return %c0_i32, %c0_i32_0 : i32, i32
  }
  func.func @transform_2(%arg0: i32) -> (i32, i32) {
    %c0_i32 = arith.constant 0 : i32
    %c0_i32_0 = arith.constant 0 : i32
    %c0_i32_1 = arith.constant 0 : i32
    return %c0_i32, %c0_i32_0 : i32, i32
  }
  func.func @transform_3(%arg0: i32) -> (i32, i32) {
    %c0_i32 = arith.constant 0 : i32
    %c0_i32_0 = arith.constant 0 : i32
    %c0_i32_1 = arith.constant 0 : i32
    return %c0_i32, %c0_i32_0 : i32, i32
  }
  func.func @transform_4(%arg0: i32) -> (i32, i32) {
    %c0_i32 = arith.constant 0 : i32
    %c0_i32_0 = arith.constant 0 : i32
    %c0_i32_1 = arith.constant 0 : i32
    return %c0_i32, %c0_i32_0 : i32, i32
  }
  func.func @transform_5(%arg0: i32) -> (i32, i32) {
    %c0_i32 = arith.constant 0 : i32
    %c0_i32_0 = arith.constant 0 : i32
    return %arg0, %c0_i32 : i32, i32
  }
}

</mosaic_0001>

<llo_original>
// kernel: tpu_custom_call.1
$region0: #{tpu_custom_call.1}
  #allocation0 [shape = 'u32[]', space=smem, size = 0x4, offset = 0x4, fixed_abs, tag = 'smem constant byte address 0x4 - core index']
  #allocation1 [shape = 'u32[72,128]{1,0:T(1,128)}', space=vmem, size = 0x9000, scoped, tag = 'internal scratch']
  %s0 = inlined_call_operand.hbm [shape: f32[16,128], index: 0, kind: input, shape index: {}]
  %s1 = inlined_call_operand.hbm [shape: bf16[128,128], index: 1, kind: input, shape index: {}]
  %s2 = inlined_call_operand.vmem [shape: f32[1,128], index: 2, kind: input, shape index: {}]
  %s3 = inlined_call_operand.hbm [shape: bf16[128,128], index: 3, kind: input, shape index: {}]
  %s4 = inlined_call_operand.vmem [shape: f32[1,128], index: 4, kind: input, shape index: {}]
  %s5 = inlined_call_operand.hbm [shape: f32[16,128], index: 5, kind: output, shape index: {}]
  %s6 = sld [smem:[#allocation0]]
  $region65: #{tpu_custom_call.1} parent=0
    _
  %s8 = ssub.s32 1, %s6
  %s9 = scalar_select 0, %s8, %s6
  $region1: #{tpu_custom_call.1} parent=0
    #allocation2 [shape = 'u8[8192]{0}', space=vmem, size = 0x2000, scoped, tag = 'input window, operand 0']
    #allocation3 [shape = 's32[2]{0}', space=sflag, size = 0x8, scoped, tag = 'scoped memory for tpu_custom_call.1']
    #allocation4 [shape = 's32[2]{0}', space=sflag, size = 0x8, scoped, tag = 'scoped memory for tpu_custom_call.1']
    #allocation5 [shape = 'u8[32768]{0}', space=vmem, size = 0x8000, scoped, tag = 'input window, operand 1, single buffered']
    #allocation6 [shape = 's32[1]{0}', space=sflag, size = 0x4, scoped, tag = 'scoped memory for tpu_custom_call.1']
    #allocation7 [shape = 'u8[32768]{0}', space=vmem, size = 0x8000, scoped, tag = 'input window, operand 3, single buffered']
    #allocation8 [shape = 'u8[8192]{0}', space=vmem, size = 0x2000, scoped, tag = 'output window, operand 0']
    %10 = vsyncpa [#allocation3], 0
    %s11 = scalar_lea.sflag [#allocation3], 1
    %12 = vsyncpa %s11, 0
    %13 = vsyncpa [#allocation6], 0
    %14 = vsyncpa [#allocation4], 0
    %s15 = scalar_lea.sflag [#allocation4], 1
    %16 = vsyncpa %s15, 0
    loop: start=0, step=1, limit=4
    $region2: #{tpu_custom_call.1} parent=1 // loop_pre_header
      _
    $region3: #{tpu_custom_call.1} parent=1 // loop_header
      %s18 = sphi 0, %s22
      %p19 = scmp.ge.s32.totalorder %s18, 4
      %s28 = sphi 0, %s30
      %s31 = sphi 0, %s28
      %s32 = sphi 0, %s31
      %s48 = sphi 0, %s32
      %s52 = sphi 0, %s52
      %s54 = sphi 0, %s52
      %s55 = sphi 0, %s54
      %s69 = sphi 0, %s55
      %s73 = sphi 0, %s73
      %s75 = sphi 0, %s73
      %s76 = sphi 0, %s75
      %s90 = sphi 0, %s76
      %s94 = sphi 0, %s94
      %s96 = sphi 0, %s94
      %s97 = sphi 0, %s96
      %s111 = sphi 0, %s97
      %s115 = sphi 0, %s115
      %s117 = sphi 0, %s115
      %s118 = sphi 0, %s117
      %s132 = sphi 0, %s118
      %s138 = sphi 0, %s140
      %s141 = sphi 0, %s138
      %s142 = sphi 0, %s141
      %s158 = sphi 0, %s142
    $region4: #{tpu_custom_call.1} parent=1 // loop_header_branch
      %21 = sbr.rel (%p19) target = $region8
    $region5: #{tpu_custom_call.1} parent=1 // loop_body
      %s23 = ssub.s32 %s18, 1
      %s24 = ssub.s32 %s18, 2
      %s25 = sadd.s32 %s18, 1
      %s26 = ssub.s32 %s18, %s25
      %p27 = scmp.eq.s32.totalorder %s26, 0
      %s29 = sadd.s32 %s28, 1
      %s30 = scalar_select %p27, %s28, %s29
      %p33 = pneg %p27
      %p34 = scmp.eq.s32.totalorder %s18, 1
      %p35 = por %p33, %p34
      %p36 = scmp.ne.s32.totalorder %s28, %s31
      %p37 = scmp.eq.s32.totalorder %s18, 0
      %p38 = por %p36, %p37
      %p39 = scmp.ne.s32.totalorder %s28, %s31
      %p40 = scmp.eq.s32.totalorder %s23, 1
      %p41 = por %p39, %p40
      %p42 = scmp.ne.s32.totalorder %s31, %s32
      %p43 = scmp.eq.s32.totalorder %s23, 0
      %p44 = por %p42, %p43
      %p45 = scmp.ne.s32.totalorder %s31, %s32
      %p46 = scmp.eq.s32.totalorder %s24, 1
      %p47 = por %p45, %p46
      %p49 = scmp.ne.s32.totalorder %s32, %s48
      %p50 = scmp.eq.s32.totalorder %s24, 0
      %p51 = por %p49, %p50
      %s53 = sadd.s32 %s52, 1
      %p56 = scmp.eq.s32.totalorder %s18, 1
      %p57 = scmp.ne.s32.totalorder %s52, %s54
      %p58 = scmp.eq.s32.totalorder %s18, 0
      %p59 = por %p57, %p58
      %p60 = scmp.ne.s32.totalorder %s52, %s54
      %p61 = scmp.eq.s32.totalorder %s23, 1
      %p62 = por %p60, %p61
      %p63 = scmp.ne.s32.totalorder %s54, %s55
      %p64 = scmp.eq.s32.totalorder %s23, 0
      %p65 = por %p63, %p64
      %p66 = scmp.ne.s32.totalorder %s54, %s55
      %p67 = scmp.eq.s32.totalorder %s24, 1
      %p68 = por %p66, %p67
      %p70 = scmp.ne.s32.totalorder %s55, %s69
      %p71 = scmp.eq.s32.totalorder %s24, 0
      %p72 = por %p70, %p71
      %s74 = sadd.s32 %s73, 1
      %p77 = scmp.eq.s32.totalorder %s18, 1
      %p78 = scmp.ne.s32.totalorder %s73, %s75
      %p79 = scmp.eq.s32.totalorder %s18, 0
      %p80 = por %p78, %p79
      %p81 = scmp.ne.s32.totalorder %s73, %s75
      %p82 = scmp.eq.s32.totalorder %s23, 1
      %p83 = por %p81, %p82
      %p84 = scmp.ne.s32.totalorder %s75, %s76
      %p85 = scmp.eq.s32.totalorder %s23, 0
      %p86 = por %p84, %p85
      %p87 = scmp.ne.s32.totalorder %s75, %s76
      %p88 = scmp.eq.s32.totalorder %s24, 1
      %p89 = por %p87, %p88
      %p91 = scmp.ne.s32.totalorder %s76, %s90
      %p92 = scmp.eq.s32.totalorder %s24, 0
      %p93 = por %p91, %p92
      %s95 = sadd.s32 %s94, 1
      %p98 = scmp.eq.s32.totalorder %s18, 1
      %p99 = scmp.ne.s32.totalorder %s94, %s96
      %p100 = scmp.eq.s32.totalorder %s18, 0
      %p101 = por %p99, %p100
      %p102 = scmp.ne.s32.totalorder %s94, %s96
      %p103 = scmp.eq.s32.totalorder %s23, 1
      %p104 = por %p102, %p103
      %p105 = scmp.ne.s32.totalorder %s96, %s97
      %p106 = scmp.eq.s32.totalorder %s23, 0
      %p107 = por %p105, %p106
      %p108 = scmp.ne.s32.totalorder %s96, %s97
      %p109 = scmp.eq.s32.totalorder %s24, 1
      %p110 = por %p108, %p109
      %p112 = scmp.ne.s32.totalorder %s97, %s111
      %p113 = scmp.eq.s32.totalorder %s24, 0
      %p114 = por %p112, %p113
      %s116 = sadd.s32 %s115, 1
      %p119 = scmp.eq.s32.totalorder %s18, 1
      %p120 = scmp.ne.s32.totalorder %s115, %s117
      %p121 = scmp.eq.s32.totalorder %s18, 0
      %p122 = por %p120, %p121
      %p123 = scmp.ne.s32.totalorder %s115, %s117
      %p124 = scmp.eq.s32.totalorder %s23, 1
      %p125 = por %p123, %p124
      %p126 = scmp.ne.s32.totalorder %s117, %s118
      %p127 = scmp.eq.s32.totalorder %s23, 0
      %p128 = por %p126, %p127
      %p129 = scmp.ne.s32.totalorder %s117, %s118
      %p130 = scmp.eq.s32.totalorder %s24, 1
      %p131 = por %p129, %p130
      %p133 = scmp.ne.s32.totalorder %s118, %s132
      %p134 = scmp.eq.s32.totalorder %s24, 0
      %p135 = por %p133, %p134
      %s136 = ssub.s32 %s18, %s25
      %p137 = scmp.eq.s32.totalorder %s136, 0
      %s139 = sadd.s32 %s138, 1
      %s140 = scalar_select %p137, %s138, %s139
      %p143 = pneg %p137
      %p144 = scmp.eq.s32.totalorder %s18, 1
      %p145 = por %p143, %p144
      %p146 = scmp.ne.s32.totalorder %s138, %s141
      %p147 = scmp.eq.s32.totalorder %s18, 0
      %p148 = por %p146, %p147
      %p149 = scmp.ne.s32.totalorder %s138, %s141
      %p150 = scmp.eq.s32.totalorder %s23, 1
      %p151 = por %p149, %p150
      %p152 = scmp.ne.s32.totalorder %s141, %s142
      %p153 = scmp.eq.s32.totalorder %s23, 0
      %p154 = por %p152, %p153
      %p155 = scmp.ne.s32.totalorder %s141, %s142
      %p156 = scmp.eq.s32.totalorder %s24, 1
      %p157 = por %p155, %p156
      %p159 = scmp.ne.s32.totalorder %s142, %s158
      %p160 = scmp.eq.s32.totalorder %s24, 0
      %p161 = por %p159, %p160
      %p162 = scmp.le.s32.totalorder 1, %s18
      %p163 = scmp.lt.s32.totalorder %s18, 3
      %p164 = pnand %p162, %p163
      %p165 = pneg %p164
      // Predicated region
      $region9: #{tpu_custom_call.1} parent=5 // pred_check
        _
      $region10: #{tpu_custom_call.1} parent=5 // pred_check_branch
        %167 = sbr.rel (%p164) target = $region12
      $region11: #{tpu_custom_call.1} parent=5 // pred_region
        %s168 = ssub.s32 %s18, 1
        // Predicated region
        $region13: #{tpu_custom_call.1} parent=11 // pred_check
          %p169 = pneg %p65
        $region14: #{tpu_custom_call.1} parent=11 // pred_check_branch
          %171 = sbr.rel (%p169) target = $region16
        $region15: #{tpu_custom_call.1} parent=11 // pred_region
          %173 = vsyncadd [#allocation6], 0
          %s174 = sshll.u32 %s1, 4
          %s175 = int_to_ptr.hbm [resolvable:$true] %s174
          %s176 = sshll.u32 [#allocation5], 4
          %s177 = int_to_ptr.vmem [resolvable:$true] %s176
          %182 = dma.hbm_to_vmem [thread:$0]  %s175, 1024, %s177, [#allocation6], 64, 64, 4
        $region16: #{tpu_custom_call.1} parent=11 // pred_fallthru
          _
        // Predicated region
        $region17: #{tpu_custom_call.1} parent=11 // pred_check
          %p183 = pneg %p86
        $region18: #{tpu_custom_call.1} parent=11 // pred_check_branch
          %185 = sbr.rel (%p183) target = $region20
        $region19: #{tpu_custom_call.1} parent=11 // pred_region
          _
        $region20: #{tpu_custom_call.1} parent=11 // pred_fallthru
          _
        // Predicated region
        $region21: #{tpu_custom_call.1} parent=11 // pred_check
          %p186 = pneg %p107
        $region22: #{tpu_custom_call.1} parent=11 // pred_check_branch
          %188 = sbr.rel (%p186) target = $region24
        $region23: #{tpu_custom_call.1} parent=11 // pred_region
          %190 = vsyncadd [#allocation6], 0
          %s191 = sshll.u32 %s3, 4
          %s192 = int_to_ptr.hbm [resolvable:$true] %s191
          %s193 = sshll.u32 [#allocation7], 4
          %s194 = int_to_ptr.vmem [resolvable:$true] %s193
          %199 = dma.hbm_to_vmem [thread:$0]  %s192, 1024, %s194, [#allocation6], 64, 64, 4
        $region24: #{tpu_custom_call.1} parent=11 // pred_fallthru
          _
        // Predicated region
        $region25: #{tpu_custom_call.1} parent=11 // pred_check
          %p200 = pneg %p128
        $region26: #{tpu_custom_call.1} parent=11 // pred_check_branch
          %202 = sbr.rel (%p200) target = $region28
        $region27: #{tpu_custom_call.1} parent=11 // pred_region
          _
        $region28: #{tpu_custom_call.1} parent=11 // pred_fallthru
          _
      $region12: #{tpu_custom_call.1} parent=5 // pred_fallthru
        _
      %p203 = scmp.lt.s32.totalorder %s18, 2
      // Predicated region
      $region29: #{tpu_custom_call.1} parent=5 // pred_check
        %p204 = pneg %p203
      $region30: #{tpu_custom_call.1} parent=5 // pred_check_branch
        %206 = sbr.rel (%p204) target = $region32
      $region31: #{tpu_custom_call.1} parent=5 // pred_region
        // Predicated region
        $region33: #{tpu_custom_call.1} parent=31 // pred_check
          %p207 = pneg %p38
        $region34: #{tpu_custom_call.1} parent=31 // pred_check_branch
          %209 = sbr.rel (%p207) target = $region36
        $region35: #{tpu_custom_call.1} parent=31 // pred_region
          %s210 = sand.u32 %s28, 1
          %s211 = scalar_lea.sflag [#allocation3], %s210
          %s212 = sand.u32 %s28, 1
          %s213 = smul.addr %s212, 8
          %s214 = scalar_lea.vmem [#allocation2], %s213
          %216 = vsyncadd %s211, 0
          %s217 = smul.addr %s18, 8
          %s218 = scalar_lea.hbm %s0, %s217
          %s220 = sshll.u32 %s218, 4
          %s221 = int_to_ptr.hbm [resolvable:$true] %s220
          %s222 = sshll.u32 %s214, 4
          %s223 = int_to_ptr.vmem [resolvable:$true] %s222
          %225 = dma.hbm_to_vmem [thread:$0]  %s221, 128, %s223, %s211
        $region36: #{tpu_custom_call.1} parent=31 // pred_fallthru
          _
      $region32: #{tpu_custom_call.1} parent=5 // pred_fallthru
        _
      %p226 = scmp.le.s32.totalorder 1, %s18
      %p227 = scmp.lt.s32.totalorder %s18, 3
      %p228 = pnand %p226, %p227
      %p229 = pneg %p228
      // Predicated region
      $region37: #{tpu_custom_call.1} parent=5 // pred_check
        _
      $region38: #{tpu_custom_call.1} parent=5 // pred_check_branch
        %231 = sbr.rel (%p228) target = $region40
      $region39: #{tpu_custom_call.1} parent=5 // pred_region
        %s232 = ssub.s32 %s18, 1
        %s233 = sand.u32 %s31, 1
        %s234 = scalar_lea.sflag [#allocation3], %s233
        %s235 = sand.u32 %s31, 1
        %s236 = smul.addr %s235, 8
        %s237 = scalar_lea.vmem [#allocation2], %s236
        // Predicated region
        $region41: #{tpu_custom_call.1} parent=39 // pred_check
          %p238 = pneg %p44
        $region42: #{tpu_custom_call.1} parent=39 // pred_check_branch
          %240 = sbr.rel (%p238) target = $region44
        $region43: #{tpu_custom_call.1} parent=39 // pred_region
          %242 = dma.done %s234, 128
        $region44: #{tpu_custom_call.1} parent=39 // pred_fallthru
          _
        // Predicated region
        $region45: #{tpu_custom_call.1} parent=39 // pred_check
          %p243 = pneg %p65
        $region46: #{tpu_custom_call.1} parent=39 // pred_check_branch
          %245 = sbr.rel (%p243) target = $region48
        $region47: #{tpu_custom_call.1} parent=39 // pred_region
          %247 = dma.done [#allocation6], 1024
        $region48: #{tpu_custom_call.1} parent=39 // pred_fallthru
          _
        // Predicated region
        $region49: #{tpu_custom_call.1} parent=39 // pred_check
          %p248 = pneg %p107
        $region50: #{tpu_custom_call.1} parent=39 // pred_check_branch
          %250 = sbr.rel (%p248) target = $region52
        $region51: #{tpu_custom_call.1} parent=39 // pred_region
          %252 = dma.done [#allocation6], 1024
        $region52: #{tpu_custom_call.1} parent=39 // pred_fallthru
          _
        %s253 = sand.u32 %s31, 1
        %s254 = scalar_lea.sflag [#allocation3], %s253
        %s255 = sand.u32 %s31, 1
        %s256 = smul.addr %s255, 8
        %s257 = scalar_lea.vmem [#allocation2], %s256
        %p258 = pneg %p44
        %p259 = pneg %p41
        %p260 = pneg %p65
        %p261 = pneg %p62
        %p262 = pneg %p86
        %p263 = pneg %p83
        %p264 = pneg %p107
        %p265 = pneg %p104
        %p266 = pneg %p128
        %p267 = pneg %p125
        %p268 = pneg %p154
        %p269 = pneg %p151
        %s270 = sand.u32 %s141, 1
        %s271 = scalar_lea.sflag [#allocation4], %s270
        %s272 = sand.u32 %s141, 1
        %s273 = smul.addr %s272, 8
        %s274 = scalar_lea.vmem [#allocation8], %s273
        %v275 = vld [vmem:[%s237] sm:$0xff]
        %v276 = vpack.c.bf16 %v275, %v275
        %v277 = vld [vmem:[#allocation5] sm:$0xf]
        %v278 = vld [vmem:[#allocation5 + $0x4] sm:$0xf]
        %v279 = vld [vmem:[#allocation5 + $0x8] sm:$0xf]
        %v280 = vld [vmem:[#allocation5 + $0xc] sm:$0xf]
        %v281 = vld [vmem:[#allocation5 + $0x10] sm:$0xf]
        %v282 = vld [vmem:[#allocation5 + $0x14] sm:$0xf]
        %v283 = vld [vmem:[#allocation5 + $0x18] sm:$0xf]
        %v284 = vld [vmem:[#allocation5 + $0x1c] sm:$0xf]
        %v285 = vld [vmem:[#allocation5 + $0x20] sm:$0xf]
        %v286 = vld [vmem:[#allocation5 + $0x24] sm:$0xf]
        %v287 = vld [vmem:[#allocation5 + $0x28] sm:$0xf]
        %v288 = vld [vmem:[#allocation5 + $0x2c] sm:$0xf]
        %v289 = vld [vmem:[#allocation5 + $0x30] sm:$0xf]
        %v290 = vld [vmem:[#allocation5 + $0x34] sm:$0xf]
        %v291 = vld [vmem:[#allocation5 + $0x38] sm:$0xf]
        %v292 = vld [vmem:[#allocation5 + $0x3c] sm:$0xf]
        %v293 = vld [vmem:[%s2] sm:$0x1]
        %v295 = vperm.slane %v293, 0
        %v313 = vunpack.c.l.b16 %v277
        %v314 = vunpack.c.l.b16 %v278
        %v315 = vunpack.c.l.b16 %v279
        %v316 = vunpack.c.l.b16 %v280
        %v317 = vunpack.c.l.b16 %v281
        %v318 = vunpack.c.l.b16 %v282
        %v319 = vunpack.c.l.b16 %v283
        %v320 = vunpack.c.l.b16 %v284
        %v321 = vunpack.c.l.b16 %v285
        %v322 = vunpack.c.l.b16 %v286
        %v323 = vunpack.c.l.b16 %v287
        %v324 = vunpack.c.l.b16 %v288
        %v325 = vunpack.c.l.b16 %v289
        %v326 = vunpack.c.l.b16 %v290
        %v327 = vunpack.c.l.b16 %v291
        %v328 = vunpack.c.l.b16 %v292
        %v329 = vpack.c.b16 %v314, %v313
        %v330 = vpack.c.b16 %v316, %v315
        %v331 = vpack.c.b16 %v318, %v317
        %v332 = vpack.c.b16 %v320, %v319
        %v333 = vpack.c.b16 %v322, %v321
        %v334 = vpack.c.b16 %v324, %v323
        %v335 = vpack.c.b16 %v326, %v325
        %v336 = vpack.c.b16 %v328, %v327
        %345 = vmatpush.bf16.msra.mxu0 %v336
        %346 = vmatpush.bf16.msra.mxu0 %v335
        %347 = vmatpush.bf16.msra.mxu0 %v334
        %348 = vmatpush.bf16.msra.mxu0 %v333
        %349 = vmatpush.bf16.msra.mxu0 %v332
        %350 = vmatpush.bf16.msra.mxu0 %v331
        %351 = vmatpush.bf16.msra.mxu0 %v330
        %352 = vmatpush.bf16.msra.mxu0 %v329
        %353 = vmatmul.bf16.gmra.mxu0 %v276
        %v354 = vpop.f32.mrf.mxu0
        %v355 = vadd.f32 %v295, %v354
        %v356 = vpop.f32.mrf.mxu0
        %357 = vdwg.mxu0
        %v358 = vmax.f32 %v355, 0.0
        %v359 = vpack.c.bf16 %v358, %v358
        %v360 = vld [vmem:[#allocation7] sm:$0xf]
        %v361 = vld [vmem:[#allocation7 + $0x4] sm:$0xf]
        %v362 = vld [vmem:[#allocation7 + $0x8] sm:$0xf]
        %v363 = vld [vmem:[#allocation7 + $0xc] sm:$0xf]
        %v364 = vld [vmem:[#allocation7 + $0x10] sm:$0xf]
        %v365 = vld [vmem:[#allocation7 + $0x14] sm:$0xf]
        %v366 = vld [vmem:[#allocation7 + $0x18] sm:$0xf]
        %v367 = vld [vmem:[#allocation7 + $0x1c] sm:$0xf]
        %v368 = vld [vmem:[#allocation7 + $0x20] sm:$0xf]
        %v369 = vld [vmem:[#allocation7 + $0x24] sm:$0xf]
        %v370 = vld [vmem:[#allocation7 + $0x28] sm:$0xf]
        %v371 = vld [vmem:[#allocation7 + $0x2c] sm:$0xf]
        %v372 = vld [vmem:[#allocation7 + $0x30] sm:$0xf]
        %v373 = vld [vmem:[#allocation7 + $0x34] sm:$0xf]
        %v374 = vld [vmem:[#allocation7 + $0x38] sm:$0xf]
        %v375 = vld [vmem:[#allocation7 + $0x3c] sm:$0xf]
        %v392 = vunpack.c.l.b16 %v360
        %v393 = vunpack.c.l.b16 %v361
        %v394 = vunpack.c.l.b16 %v362
        %v395 = vunpack.c.l.b16 %v363
        %v396 = vunpack.c.l.b16 %v364
        %v397 = vunpack.c.l.b16 %v365
        %v398 = vunpack.c.l.b16 %v366
        %v399 = vunpack.c.l.b16 %v367
        %v400 = vunpack.c.l.b16 %v368
        %v401 = vunpack.c.l.b16 %v369
        %v402 = vunpack.c.l.b16 %v370
        %v403 = vunpack.c.l.b16 %v371
        %v404 = vunpack.c.l.b16 %v372
        %v405 = vunpack.c.l.b16 %v373
        %v406 = vunpack.c.l.b16 %v374
        %v407 = vunpack.c.l.b16 %v375
        %v408 = vpack.c.b16 %v393, %v392
        %v409 = vpack.c.b16 %v395, %v394
        %v410 = vpack.c.b16 %v397, %v396
        %v411 = vpack.c.b16 %v399, %v398
        %v412 = vpack.c.b16 %v401, %v400
        %v413 = vpack.c.b16 %v403, %v402
        %v414 = vpack.c.b16 %v405, %v404
        %v415 = vpack.c.b16 %v407, %v406
        %424 = vmatpush.bf16.msra.mxu0 %v415
        %425 = vmatpush.bf16.msra.mxu0 %v414
        %426 = vmatpush.bf16.msra.mxu0 %v413
        %427 = vmatpush.bf16.msra.mxu0 %v412
        %428 = vmatpush.bf16.msra.mxu0 %v411
        %429 = vmatpush.bf16.msra.mxu0 %v410
        %430 = vmatpush.bf16.msra.mxu0 %v409
        %431 = vmatpush.bf16.msra.mxu0 %v408
        %432 = vmatmul.bf16.gmra.mxu0 %v359
        %v433 = vpop.f32.mrf.mxu0
        %v434 = vadd.f32 0.0, %v433
        %v435 = vpop.f32.mrf.mxu0
        %436 = vdwg.mxu0
        %v437 = vadd.f32 %v275, %v434
        %v438 = vld [vmem:[%s4] sm:$0x1]
        %v440 = vperm.slane %v438, 0
        %v442 = vadd.f32 %v437, %v440
        %v443 = vmax.f32 %v442, 0.0
        %444 = vst [vmem:[%s274] sm:$0xff] %v443
        %s445 = sand.u32 %s141, 1
        %s446 = scalar_lea.sflag [#allocation4], %s445
        %s447 = sand.u32 %s141, 1
        %s448 = smul.addr %s447, 8
        %s449 = scalar_lea.vmem [#allocation8], %s448
        // Predicated region
        $region53: #{tpu_custom_call.1} parent=39 // pred_check
          %p450 = pneg %p151
        $region54: #{tpu_custom_call.1} parent=39 // pred_check_branch
          %452 = sbr.rel (%p450) target = $region56
        $region55: #{tpu_custom_call.1} parent=39 // pred_region
          %454 = vsyncadd %s446, 0
          %s455 = smul.addr %s23, 8
          %s456 = scalar_lea.hbm %s5, %s455
          %s458 = sshll.u32 %s449, 4
          %s459 = int_to_ptr.vmem [resolvable:$true] %s458
          %s460 = sshll.u32 %s456, 4
          %s461 = int_to_ptr.hbm [resolvable:$true] %s460
          %463 = dma.vmem_to_hbm [thread:$0]  %s459, 128, %s461, %s446
        $region56: #{tpu_custom_call.1} parent=39 // pred_fallthru
          _
      $region40: #{tpu_custom_call.1} parent=5 // pred_fallthru
        _
      %p464 = scmp.le.s32.totalorder 2, %s18
      // Predicated region
      $region57: #{tpu_custom_call.1} parent=5 // pred_check
        %p465 = pneg %p464
      $region58: #{tpu_custom_call.1} parent=5 // pred_check_branch
        %467 = sbr.rel (%p465) target = $region60
      $region59: #{tpu_custom_call.1} parent=5 // pred_region
        %s468 = ssub.s32 %s18, 2
        // Predicated region
        $region61: #{tpu_custom_call.1} parent=59 // pred_check
          %p469 = pneg %p157
        $region62: #{tpu_custom_call.1} parent=59 // pred_check_branch
          %471 = sbr.rel (%p469) target = $region64
        $region63: #{tpu_custom_call.1} parent=59 // pred_region
          %s472 = sand.u32 %s142, 1
          %s473 = scalar_lea.sflag [#allocation4], %s472
          %s474 = sand.u32 %s142, 1
          %s475 = smul.addr %s474, 8
          %s476 = scalar_lea.vmem [#allocation8], %s475
          %478 = dma.done %s473, 128
        $region64: #{tpu_custom_call.1} parent=59 // pred_fallthru
          _
      $region60: #{tpu_custom_call.1} parent=5 // pred_fallthru
        _
    $region6: #{tpu_custom_call.1} parent=1 // loop_footer
      %s22 = sadd.s32 1, %s18
    $region7: #{tpu_custom_call.1} parent=1 // loop_footer_branch
      %17 = sbr.rel target = $region3
    $region8: #{tpu_custom_call.1} parent=1 // loop_exit
      _
    %479 = vsyncpa [#allocation3], 1
    %s480 = scalar_lea.sflag [#allocation3], 1
    %481 = vsyncpa %s480, 1
    %482 = vsyncpa [#allocation6], 1
    %483 = vsyncpa [#allocation4], 1
    %s484 = scalar_lea.sflag [#allocation4], 1
    %485 = vsyncpa %s484, 1

</llo_original>
